<compile_context>
chip_gen: v5e
topology: v5e:2x2
jax: 0.10.0
libtpu: 0.0.40
codegen_flags: <defaults>
</compile_context>

<pallas_src>
import jax
import jax.numpy as jnp
from jax.experimental import pallas as pl
from jax.experimental.pallas import tpu as pltpu


# ----------------------------------------------------------------------------
# Helpers
# ----------------------------------------------------------------------------
def _pick_tile(n, target, base):
    """Largest tile <= target that is a multiple of `base` and divides n.

    Falls back to n (full axis) if no clean divisor exists -- a full-extent
    block is always layout-legal on TPU.
    """
    if n <= target:
        return n
    t = (target // base) * base
    while t >= base:
        if n % t == 0:
            return t
        t -= base
    return n


# ----------------------------------------------------------------------------
# Parameter preparation (run ONCE at init, not per forward)
# ----------------------------------------------------------------------------
def init_linear_probe_params(weight, bias, *, tile_classes=512,
                             weight_dtype=jnp.bfloat16):
    """Transpose, cast and class-pad the nn.Linear parameters once.

    weight: [C, D]  (torch nn.Linear layout)
    bias:   [C]
    Returns a dict with:
      weight_t : [D, c_pad] in `weight_dtype` (bf16 halves the HBM weight
                 stream, which dominates at small batch)
      bias2d   : [1, c_pad] f32
      num_classes, tile_classes
    """
    C, D = weight.shape
    assert bias.shape == (C,), "bias/weight class mismatch"
    assert tile_classes % 128 == 0, "tile_classes must be a multiple of 128"

    n_tiles = pl.cdiv(C, tile_classes)
    c_pad = n_tiles * tile_classes

    weight_t = jnp.asarray(weight).T.astype(weight_dtype)          # [D, C]
    bias_f32 = jnp.asarray(bias, jnp.float32)
    if c_pad != C:
        # Pad the class axis once so every kernel tile is full and stores stay
        # lane-dense.  This copy happens at init only.
        weight_t = jnp.pad(weight_t, ((0, 0), (0, c_pad - C)))
        bias_f32 = jnp.pad(bias_f32, (0, c_pad - C))
    bias2d = bias_f32.reshape(1, c_pad)

    return {"weight_t": weight_t, "bias2d": bias2d,
            "num_classes": C, "tile_classes": tile_classes}


# ----------------------------------------------------------------------------
# Pooling kernel: tiled mean over the sequence axis
# ----------------------------------------------------------------------------
def _mean_pool(x, *, out_dtype, tile_b=8, tile_s=128):
    """[B, S, D] -> [B, D] mean over dim=1; f32 accumulation, `out_dtype` store."""
    B, S, D = x.shape
    tb = _pick_tile(B, tile_b, 8)   # B tile: multiple of 8 (sublane rule) or full B
    ts = _pick_tile(S, tile_s, 8)   # S tile: reduction chunk
    inv_s = 1.0 / float(S)

    def kernel(x_ref, o_ref, acc_ref):
        # x_ref: [tb, ts, D]; o_ref: [tb, D]; acc_ref: [tb, D] f32 scratch.
        @pl.when(pl.program_id(1) == 0)
        def _():
            acc_ref[...] = jnp.zeros_like(acc_ref)

        acc_ref[...] += jnp.sum(x_ref[...].astype(jnp.float32), axis=1)

        @pl.when(pl.program_id(1) == pl.num_programs(1) - 1)
        def _():
            # Emit pooled activations directly in the matmul/weight dtype.
            o_ref[...] = (acc_ref[...] * inv_s).astype(o_ref.dtype)

    return pl.pallas_call(
        kernel,
        out_shape=jax.ShapeDtypeStruct((B, D), out_dtype),
        grid_spec=pltpu.PrefetchScalarGridSpec(
            num_scalar_prefetch=0,
            grid=(B // tb, S // ts),            # (batch tiles, seq reduction tiles)
            in_specs=[pl.BlockSpec((tb, ts, D), lambda i, j: (i, j, 0))],
            out_specs=pl.BlockSpec((tb, D), lambda i, j: (i, 0)),
            scratch_shapes=[pltpu.VMEM((tb, D), jnp.float32)],
        ),
        compiler_params=pltpu.CompilerParams(
            dimension_semantics=("parallel", "arbitrary"),
        ),
    )(x)


# ----------------------------------------------------------------------------
# Linear kernel: (M, D) x (D, C) class-tiled MXU matmul + bias
# ----------------------------------------------------------------------------
def _linear(x2d, weight_t, bias2d, *, tile_classes, tile_m=256):
    """x2d: [M, D] (already in weight dtype); weight_t: [D, c_pad];
    bias2d: [1, c_pad] f32 -> [M, c_pad] f32 logits."""
    M, D = x2d.shape
    D2, c_pad = weight_t.shape
    assert D == D2, "feature_dim mismatch between features and weight"
    assert c_pad % tile_classes == 0, "params were padded for a different tile_classes"

    tm = _pick_tile(M, tile_m, 8)
    n_m = M // tm
    n_c = c_pad // tile_classes

    w_bytes = jnp.dtype(weight_t.dtype).itemsize
    x_bytes = jnp.dtype(x2d.dtype).itemsize

    def kernel(x_ref, w_ref, b_ref, o_ref):
        # x_ref: [tm, D]; w_ref: [D, tile_classes]; b_ref: [1, tile_classes] f32.
        # No per-step cast: x already matches the weight dtype.
        o_ref[...] = jnp.dot(x_ref[...], w_ref[...],
                             preferred_element_type=jnp.float32) + b_ref[...]

    return pl.pallas_call(
        kernel,
        out_shape=jax.ShapeDtypeStruct((M, c_pad), jnp.float32),
        grid_spec=pltpu.PrefetchScalarGridSpec(
            num_scalar_prefetch=0,
            grid=(n_m, n_c),
            in_specs=[
                pl.BlockSpec((tm, D), lambda i, j: (i, 0)),              # activations
                pl.BlockSpec((D, tile_classes), lambda i, j: (0, j)),    # weight tile
                pl.BlockSpec((1, tile_classes), lambda i, j: (0, j)),    # bias tile
            ],
            out_specs=pl.BlockSpec((tm, tile_classes), lambda i, j: (i, j)),
        ),
        compiler_params=pltpu.CompilerParams(
            # Both axes independent -> shard across v7x's 2 TensorCores.
            dimension_semantics=("parallel", "parallel"),
        ),
        cost_estimate=pl.CostEstimate(
            flops=2 * M * D * c_pad,
            transcendentals=0,
            bytes_accessed=(M * D * x_bytes            # activations
                            + D * c_pad * w_bytes      # weight stream (dominant)
                            + 4 * c_pad                # bias
                            + 4 * M * c_pad),          # logits
        ),
    )(x2d, weight_t, bias2d)


# ----------------------------------------------------------------------------
# Forward
# ----------------------------------------------------------------------------
def linear_probe_forward(params, layer_features, *, pooling=True, tile_m=256):
    """Forward pass of LinearProbeClassifier.

    params:         dict from init_linear_probe_params (pre-padded weights/bias)
    layer_features: [B, S, D] if pooling else [..., D]
    Returns float32 logits: [B, C] if pooling else [..., C].
    """
    weight_t = params["weight_t"]
    bias2d = params["bias2d"]
    C = params["num_classes"]
    tile_classes = params["tile_classes"]

    if pooling:
        # Tiled sequence-mean computed once; pooled output already in weight dtype.
        x2d = _mean_pool(layer_features, out_dtype=weight_t.dtype)      # [B, D]
        lead_shape = layer_features.shape[:1]
    else:
        # Per-token path: apply the Linear over the last dim.  Single wrapper
        # cast to the weight dtype (instead of a repeated in-kernel cast).
        lead_shape = layer_features.shape[:-1]
        x2d = layer_features.reshape(-1, layer_features.shape[-1]).astype(weight_t.dtype)

    logits = _linear(x2d, weight_t, bias2d, tile_classes=tile_classes, tile_m=tile_m)

    if logits.shape[-1] != C:
        logits = logits[:, :C]   # drop padded classes (negligible for pooled path)
    return logits.reshape(*lead_shape, C)


# ----------------------------------------------------------------------------
# Demo / self-test
# ----------------------------------------------------------------------------
if __name__ == "__main__":
    # Small shapes consistent with the module (defaults feature_dim=1152,
    # num_classes=1000, scaled down): batch=2, seq=8, feature_dim=128.
    # num_classes=250 deliberately NOT a multiple of 128 to exercise the
    # class-padding path (mirrors the real C=1000 case).
    B, S, D, C = 2, 8, 128, 250

    key = jax.random.PRNGKey(0)
    kx, kw, kb = jax.random.split(key, 3)

    layer_features = jax.random.normal(kx, (B, S, D), dtype=jnp.float32)

    # torch.nn.Linear init: uniform(-1/sqrt(D), 1/sqrt(D)); torch layout [C, D].
    bound = 1.0 / float(D) ** 0.5
    weight = jax.random.uniform(kw, (C, D), jnp.float32, minval=-bound, maxval=bound)
    bias = jax.random.uniform(kb, (C,), jnp.float32, minval=-bound, maxval=bound)

    # One-time parameter prep (transpose + bf16 cast + class pad).
    # tile_classes=128 keeps >=2 class tiles at this toy C (grid class axis = 2);
    # at the production C~1000 use the default 512 (c_pad=1024 -> 2 even tiles
    # for v7x's dual TCs; pass 1024 on single-TC v6e/v5e).
    params = init_linear_probe_params(weight, bias, tile_classes=128)

    # --- pooling=True path (module default) ---
    logits = linear_probe_forward(params, layer_features, pooling=True)
    logits = jax.block_until_ready(logits)
    assert logits.shape == (B, C)

    # Reference: same bf16-rounded weights/activations in f32, so only dot
    # ordering differs (the bf16 activation cast is the documented deviation
    # from the PyTorch f32 reference, acceptable for a linear probe).
    w_t_f32 = params["weight_t"][:, :C].astype(jnp.float32)
    pooled_ref = jnp.mean(layer_features.astype(jnp.float32), axis=1)
    pooled_q = pooled_ref.astype(jnp.bfloat16).astype(jnp.float32)
    ref = pooled_q @ w_t_f32 + bias
    assert jnp.allclose(logits, ref, atol=1e-2, rtol=1e-2), "pooled path mismatch"

    # --- pooling=False (per-token) path ---
    logits_tok = linear_probe_forward(params, layer_features, pooling=False)
    logits_tok = jax.block_until_ready(logits_tok)
    assert logits_tok.shape == (B, S, C)

    x_q = layer_features.astype(jnp.bfloat16).astype(jnp.float32)
    ref_tok = x_q @ w_t_f32 + bias
    assert jnp.allclose(logits_tok, ref_tok, atol=1e-2, rtol=1e-2), \
        "per-token path mismatch"

    print("KERNEL_OK")
</pallas_src>

<mosaic_0001>
module attributes {stable_mosaic.version = 11 : i64} {
  func.func @kernel(%arg0: i32, %arg1: i32, %arg2: memref<2x8x128xf32, #tpu.memory_space<vmem>>, %arg3: memref<2x128xbf16, #tpu.memory_space<vmem>>, %arg4: memref<2x128xf32, #tpu.memory_space<vmem>>) attributes {dimension_semantics = [#tpu.dimension_semantics<parallel>, #tpu.dimension_semantics<arbitrary>], iteration_bounds = array<i64: 1, 1>, scalar_prefetch = 0 : i64, scratch_operands = 1 : i64, tpu.core_type = #tpu.core_type<tc>, window_params = [{transform_indices = @transform_0, window_bounds = array<i64: 2, 8, 128>}, {transform_indices = @transform_1, window_bounds = array<i64: 2, 128>}]} {
    %c0_i32 = arith.constant 0 : i32
    %0 = arith.cmpi eq, %arg1, %c0_i32 : i32
    %1 = arith.extui %0 : i1 to i32
    %c0_i32_0 = arith.constant 0 : i32
    %2 = arith.cmpi ne, %1, %c0_i32_0 : i32
    scf.if %2 {
      %cst_9 = arith.constant 0.000000e+00 : f32
      %11 = vector.broadcast %cst_9 : f32 to vector<2x128xf32>
      %c0_10 = arith.constant 0 : index
      %c0_11 = arith.constant 0 : index
      %12 = vector.load %arg4[%c0_10, %c0_11] : memref<2x128xf32, #tpu.memory_space<vmem>>, vector<2x128xf32>
      tpu.vector_store %arg4[%c0_10, %c0_11], %11 {strides = array<i32>} : memref<2x128xf32, #tpu.memory_space<vmem>>, vector<2x128xf32>,
    } else {
    }
    %c0 = arith.constant 0 : index
    %c0_1 = arith.constant 0 : index
    %3 = vector.load %arg4[%c0, %c0_1] : memref<2x128xf32, #tpu.memory_space<vmem>>, vector<2x128xf32>
    %c0_2 = arith.constant 0 : index
    %c0_3 = arith.constant 0 : index
    %c0_4 = arith.constant 0 : index
    %4 = vector.load %arg2[%c0_2, %c0_3, %c0_4] : memref<2x8x128xf32, #tpu.memory_space<vmem>>, vector<2x8x128xf32>
    %cst = arith.constant dense<0.000000e+00> : vector<2x128xf32>
    %5 = vector.multi_reduction <add>, %4, %cst [1] : vector<2x8x128xf32> to vector<2x128xf32>
    %6 = arith.addf %3, %5 : vector<2x128xf32>
    %c0_5 = arith.constant 0 : index
    %c0_6 = arith.constant 0 : index
    %7 = vector.load %arg4[%c0_5, %c0_6] : memref<2x128xf32, #tpu.memory_space<vmem>>, vector<2x128xf32>
    tpu.vector_store %arg4[%c0_5, %c0_6], %6 {strides = array<i32>} : memref<2x128xf32, #tpu.memory_space<vmem>>, vector<2x128xf32>,
    %c0_i32_7 = arith.constant 0 : i32
    %8 = arith.cmpi eq, %arg1, %c0_i32_7 : i32
    %9 = arith.extui %8 : i1 to i32
    %c0_i32_8 = arith.constant 0 : i32
    %10 = arith.cmpi ne, %9, %c0_i32_8 : i32
    scf.if %10 {
      %c0_9 = arith.constant 0 : index
      %c0_10 = arith.constant 0 : index
      %11 = vector.load %arg4[%c0_9, %c0_10] : memref<2x128xf32, #tpu.memory_space<vmem>>, vector<2x128xf32>
      %cst_11 = arith.constant 1.250000e-01 : f32
      %12 = vector.broadcast %cst_11 : f32 to vector<2x128xf32>
      %13 = arith.mulf %11, %12 : vector<2x128xf32>
      %14 = arith.truncf %13 : vector<2x128xf32> to vector<2x128xbf16>
      %c0_12 = arith.constant 0 : index
      %c0_13 = arith.constant 0 : index
      %15 = vector.load %arg3[%c0_12, %c0_13] : memref<2x128xbf16, #tpu.memory_space<vmem>>, vector<2x128xbf16>
      tpu.vector_store %arg3[%c0_12, %c0_13], %14 {strides = array<i32>} : memref<2x128xbf16, #tpu.memory_space<vmem>>, vector<2x128xbf16>,
    } else {
    }
    return
  }
  func.func @transform_0(%arg0: i32, %arg1: i32) -> (i32, i32, i32) {
    %c0_i32 = arith.constant 0 : i32
    %c0_i32_0 = arith.constant 0 : i32
    return %arg0, %arg1, %c0_i32 : i32, i32, i32
  }
  func.func @transform_1(%arg0: i32, %arg1: i32) -> (i32, i32) {
    %c0_i32 = arith.constant 0 : i32
    %c0_i32_0 = arith.constant 0 : i32
    return %arg0, %c0_i32 : i32, i32
  }
}

</mosaic_0001>

<llo_original>
// kernel: tpu_custom_call.1
$region0: #{tpu_custom_call.1}
  #allocation0 [shape = 'u32[]', space=smem, size = 0x4, offset = 0x4, fixed_abs, tag = 'smem constant byte address 0x4 - core index']
  #allocation1 [shape = 'u32[72,128]{1,0:T(1,128)}', space=vmem, size = 0x9000, scoped, tag = 'internal scratch']
  #allocation2 [shape = 'f32[2,128]{1,0:T(2,128)}', space=vmem, size = 0x400, scoped, tag = 'scratch operand']
  %s0 = inlined_call_operand.hbm [shape: f32[2,8,128], index: 0, kind: input, shape index: {}]
  %s1 = inlined_call_operand.hbm [shape: bf16[2,128], index: 1, kind: output, shape index: {}]
  %s2 = sld [smem:[#allocation0]]
  $region26: #{tpu_custom_call.1} parent=0
    _
  %s4 = ssub.s32 1, %s2
  %s5 = scalar_select 0, %s4, %s2
  $region1: #{tpu_custom_call.1} parent=0
    #allocation3 [shape = 'u8[8192]{0}', space=vmem, size = 0x2000, scoped, tag = 'input window, operand 0, single buffered']
    #allocation4 [shape = 's32[1]{0}', space=sflag, size = 0x4, scoped, tag = 'scoped memory for tpu_custom_call.1']
    #allocation5 [shape = 's32[1]{0}', space=sflag, size = 0x4, scoped, tag = 'scoped memory for tpu_custom_call.1']
    #allocation6 [shape = 'u8[512]{0}', space=vmem, size = 0x400, scoped, tag = 'output window, operand 0, single buffered']
    %6 = vsyncpa [#allocation4], 0
    %7 = vsyncpa [#allocation5], 0
    // Predicated region
    $region2: #{tpu_custom_call.1} parent=1 // pred_check
      _
    $region3: #{tpu_custom_call.1} parent=1 // pred_check_branch
      %9 = sbr.rel (0) target = $region5
    $region4: #{tpu_custom_call.1} parent=1 // pred_region
      %11 = vsyncadd [#allocation4], 0
      %s12 = sshll.u32 %s0, 4
      %s13 = int_to_ptr.hbm [resolvable:$true] %s12
      %s14 = sshll.u32 [#allocation3], 4
      %s15 = int_to_ptr.vmem [resolvable:$true] %s14
      %20 = dma.hbm_to_vmem [thread:$0]  %s13, 256, %s15, [#allocation4], 128, 128, 8
    $region5: #{tpu_custom_call.1} parent=1 // pred_fallthru
      _
    // Predicated region
    $region6: #{tpu_custom_call.1} parent=1 // pred_check
      _
    $region7: #{tpu_custom_call.1} parent=1 // pred_check_branch
      %22 = sbr.rel (0) target = $region9
    $region8: #{tpu_custom_call.1} parent=1 // pred_region
      %24 = dma.done [#allocation4], 256
    $region9: #{tpu_custom_call.1} parent=1 // pred_fallthru
      _
    %p25 = scmp.eq.s32.totalorder 0, 0
    // Predicated region
    $region10: #{tpu_custom_call.1} parent=1 // pred_check
      %p26 = pneg %p25
    $region11: #{tpu_custom_call.1} parent=1 // pred_check_branch
      %28 = sbr.rel (%p26) target = $region13
    $region12: #{tpu_custom_call.1} parent=1 // pred_region
      %29 = vst [vmem:[#allocation2] sm:$0x3] 0.0
    $region13: #{tpu_custom_call.1} parent=1 // pred_fallthru
      _
    %v30 = vld [vmem:[#allocation2] sm:$0x3]
    %v31 = vld [vmem:[#allocation3] sm:$0xff]
    %v32 = vld [vmem:[#allocation3 + $0x8] sm:$0xff]
    %v33 = vrot.slane %v31, 4
    %v34 = vadd.f32 %v31, %v33
    %v35 = vrot.slane %v34, 2
    %v36 = vadd.f32 %v34, %v35
    %v37 = vrot.slane %v36, 1
    %v38 = vadd.f32 %v36, %v37
    %v39 = vrot.slane %v32, 4
    %v40 = vadd.f32 %v32, %v39
    %v41 = vrot.slane %v40, 2
    %v42 = vadd.f32 %v40, %v41
    %v43 = vrot.slane %v42, 1
    %v44 = vadd.f32 %v42, %v43
    %vm47 = vcmask 1041409
    %v48 = vsel %vm47, %v44, %v38
    %v50 = vadd.f32 %v30, %v48
    %51 = vst [vmem:[#allocation2] sm:$0x3] %v50
    // Predicated region
    $region14: #{tpu_custom_call.1} parent=1 // pred_check
      %p52 = pneg %p25
    $region15: #{tpu_custom_call.1} parent=1 // pred_check_branch
      %54 = sbr.rel (%p52) target = $region17
    $region16: #{tpu_custom_call.1} parent=1 // pred_region
      %v55 = vld [vmem:[#allocation2] sm:$0x3]
      %v56 = vmul.f32 %v55, 0.125
      %v57 = vpack.c.bf16 %v56, %v56
      %58 = vst [vmem:[#allocation6] sm:$0x1] %v57
    $region17: #{tpu_custom_call.1} parent=1 // pred_fallthru
      _
    // Predicated region
    $region18: #{tpu_custom_call.1} parent=1 // pred_check
      _
    $region19: #{tpu_custom_call.1} parent=1 // pred_check_branch
      %60 = sbr.rel (0) target = $region21
    $region20: #{tpu_custom_call.1} parent=1 // pred_region
      %62 = vsyncadd [#allocation5], 0
      %s64 = sshll.u32 [#allocation6], 4
      %s65 = int_to_ptr.vmem [resolvable:$true] %s64
      %s66 = sshll.u32 %s1, 4
      %s67 = int_to_ptr.hbm [resolvable:$true] %s66
      %69 = dma.vmem_to_hbm [thread:$0]  %s65, 16, %s67, [#allocation5]
    $region21: #{tpu_custom_call.1} parent=1 // pred_fallthru
      _
    // Predicated region
    $region22: #{tpu_custom_call.1} parent=1 // pred_check
      _
    $region23: #{tpu_custom_call.1} parent=1 // pred_check_branch
      %71 = sbr.rel (0) target = $region25
    $region24: #{tpu_custom_call.1} parent=1 // pred_region
      %73 = dma.done [#allocation5], 16
    $region25: #{tpu_custom_call.1} parent=1 // pred_fallthru
      _
    %74 = vsyncpa [#allocation4], 1
    %75 = vsyncpa [#allocation5], 1

</llo_original>
